<compile_context>
chip_gen: v5e
topology: v5e:2x2
jax: 0.10.0
libtpu: 0.0.40
codegen_flags: <defaults>
</compile_context>

<pallas_src>
import math

import jax
import jax.numpy as jnp
from jax.experimental import pallas as pl
from jax.experimental.pallas import tpu as pltpu


def _encode_kernel(x_ref, w_ref, peb_ref, o_ref):
    # x_ref  : (TB, TS, K)   flattened keypoint features
    # w_ref  : (K, Dp)       in_proj weight (transposed, D padded to mult. of 128)
    # peb_ref: (TS, Dp)      positional encoding + bias (pre-folded, f32)
    # o_ref  : (TB, TS, Dp)
    TB, TS, K = x_ref.shape
    Dp = w_ref.shape[1]
    x = x_ref[...].reshape(TB * TS, K)
    y = jnp.dot(x, w_ref[...], preferred_element_type=jnp.float32)   # MXU, f32 acc
    y = y.reshape(TB, TS, Dp) + peb_ref[...][None, :, :]              # f32 epilogue
    o_ref[...] = y.astype(o_ref.dtype)


def _pick_tile(n, cap, quantum):
    """Largest divisor of n that is <= cap and a multiple of `quantum`.
    Full extent n always qualifies (matches Pallas' (8,128) block-shape rule)."""
    cap = max(1, min(n, cap))
    for d in range(cap, 0, -1):
        if n % d == 0 and (d % quantum == 0 or d == n):
            return d
    return n


def input_encoding_mixed(x, missing_mask, w, b, pe, *, use_bf16_inputs=False):
    """x: (B, S, n_keypoints, input_size). missing_mask unused (as in PyTorch).
    w: (K, D) transposed in_proj weight, b: (1, D) bias, pe: (max_len>=S, D)."""
    del missing_mask  # unused, matching the PyTorch forward
    B, S, NK, IS = x.shape
    K = NK * IS
    D = w.shape[1]
    x_flat = x.reshape(B, S, K)                       # == torch .view

    # Lane-dense output: pad d_model up to a multiple of 128.
    Dp = ((D + 127) // 128) * 128
    pad_d = Dp - D

    # Fold the bias into the (sliced) positional encoding; keep it f32.
    peb = (pe[:S].astype(jnp.float32) + b.reshape(1, D).astype(jnp.float32))
    if pad_d:
        w_p = jnp.pad(w, ((0, 0), (0, pad_d)))
        peb = jnp.pad(peb, ((0, 0), (0, pad_d)))
    else:
        w_p = w

    if use_bf16_inputs:                               # halves HBM read traffic
        x_in = x_flat.astype(jnp.bfloat16)
        w_in = w_p.astype(jnp.bfloat16)
    else:
        x_in = x_flat
        w_in = w_p

    # Row-tile selection: ~512 rows per grid step (measured ~85% of HBM roofline),
    # sequence tile a multiple of 8 sublanes (or full extent).
    TS = _pick_tile(S, 512, 8)
    TB = _pick_tile(B, max(1, 512 // TS), 1)
    grid = (B // TB, S // TS)

    itemsize_x = jnp.dtype(x_in.dtype).itemsize
    itemsize_w = jnp.dtype(w_in.dtype).itemsize
    # Double-buffered footprint (w / peb have constant index_maps; their second
    # buffer is tiny here, so default buffering is kept rather than Buffered(1)).
    vmem_need = (2 * TB * TS * K * itemsize_x
                 + 2 * TB * TS * Dp * 4
                 + 2 * TS * Dp * 4
                 + 2 * K * Dp * itemsize_w)
    vmem_limit = int(min(max(2 * vmem_need, 8 << 20), 48 << 20))   # v7x-safe

    cost = pl.CostEstimate(
        flops=2 * B * S * K * Dp,
        transcendentals=0,
        bytes_accessed=int(x_in.size * itemsize_x + w_in.size * itemsize_w
                           + peb.size * 4 + B * S * Dp * 4),
    )

    out_padded = pl.pallas_call(
        _encode_kernel,
        out_shape=jax.ShapeDtypeStruct((B, S, Dp), jnp.float32),
        grid_spec=pltpu.PrefetchScalarGridSpec(
            num_scalar_prefetch=0,
            grid=grid,
            in_specs=[
                pl.BlockSpec((TB, TS, K), lambda bi, si: (bi, si, 0)),  # x tile
                pl.BlockSpec((K, Dp), lambda bi, si: (0, 0)),           # weight
                pl.BlockSpec((TS, Dp), lambda bi, si: (si, 0)),         # pe + bias
            ],
            out_specs=pl.BlockSpec((TB, TS, Dp), lambda bi, si: (bi, si, 0)),
        ),
        compiler_params=pltpu.CompilerParams(
            dimension_semantics=("parallel", "parallel"),
            vmem_limit_bytes=vmem_limit,
        ),
        cost_estimate=cost,
    )(x_in, w_in, peb)

    return out_padded[:, :, :D] if pad_d else out_padded


def make_fixed_positional_encoding(max_len, d_model):
    """Standard sinusoidal PE, matching FixedPositionalEncoding."""
    position = jnp.arange(max_len, dtype=jnp.float32)[:, None]
    div_term = jnp.exp(
        jnp.arange(0, d_model, 2, dtype=jnp.float32)
        * (-math.log(10000.0) / d_model)
    )
    angles = position * div_term[None, :]
    pe = jnp.zeros((max_len, d_model), dtype=jnp.float32)
    pe = pe.at[:, 0::2].set(jnp.sin(angles))
    pe = pe.at[:, 1::2].set(jnp.cos(angles))
    return pe


def reference(x, w, b, pe):
    B, S, NK, IS = x.shape
    xf = x.reshape(B, S, NK * IS)
    return xf @ w + b[None] + pe[None]


if __name__ == "__main__":
    # Small shapes consistent with the module.
    batch = 2
    max_seq_len = 8
    n_keypoints = 4
    input_size = 2
    d_model = 32
    K = n_keypoints * input_size

    key = jax.random.PRNGKey(0)
    kx, kw, kb = jax.random.split(key, 3)

    # Deterministic synthetic parameters (xavier-uniform-ish for the weight).
    limit = math.sqrt(6.0 / (K + d_model))
    w = jax.random.uniform(kw, (K, d_model), jnp.float32, -limit, limit)   # (K, D)
    b = jax.random.uniform(kb, (1, d_model), jnp.float32, -0.1, 0.1)       # (1, D)
    pe = make_fixed_positional_encoding(max_seq_len, d_model)              # (S, D)
    # TODO(synk): dropout inside the original positional-encoder is identity at
    # inference time and is therefore omitted.

    x = jax.random.normal(kx, (batch, max_seq_len, n_keypoints, input_size),
                          jnp.float32)
    missing_mask = jnp.zeros((batch, max_seq_len, n_keypoints), jnp.float32)

    out = input_encoding_mixed(x, missing_mask, w, b, pe)
    out = jax.block_until_ready(out)

    ref = reference(x, w, b[0], pe)
    assert out.shape == (batch, max_seq_len, d_model)
    assert jnp.allclose(out, ref, atol=1e-5, rtol=1e-5), "mismatch vs reference"

    print("KERNEL_OK")
</pallas_src>

<mosaic_0001>
module attributes {stable_mosaic.version = 11 : i64} {
  func.func @_encode_kernel(%arg0: i32, %arg1: i32, %arg2: memref<2x8x8xf32, #tpu.memory_space<vmem>>, %arg3: memref<8x128xf32, #tpu.memory_space<vmem>>, %arg4: memref<8x128xf32, #tpu.memory_space<vmem>>, %arg5: memref<2x8x128xf32, #tpu.memory_space<vmem>>) attributes {dimension_semantics = [#tpu.dimension_semantics<parallel>, #tpu.dimension_semantics<parallel>], iteration_bounds = array<i64: 1, 1>, scalar_prefetch = 0 : i64, scratch_operands = 0 : i64, tpu.core_type = #tpu.core_type<tc>, window_params = [{transform_indices = @transform_0, window_bounds = array<i64: 2, 8, 8>}, {pipeline_mode = #tpu.pipeline_mode<synchronous>, transform_indices = @transform_1, window_bounds = array<i64: 8, 128>}, {transform_indices = @transform_2, window_bounds = array<i64: 8, 128>}, {transform_indices = @transform_3, window_bounds = array<i64: 2, 8, 128>}]} {
    %c0 = arith.constant 0 : index
    %c0_0 = arith.constant 0 : index
    %c0_1 = arith.constant 0 : index
    %0 = vector.load %arg2[%c0, %c0_0, %c0_1] : memref<2x8x8xf32, #tpu.memory_space<vmem>>, vector<2x8x8xf32>
    %1 = vector.shape_cast %0 : vector<2x8x8xf32> to vector<16x8xf32>
    %c0_2 = arith.constant 0 : index
    %c0_3 = arith.constant 0 : index
    %2 = vector.load %arg3[%c0_2, %c0_3] : memref<8x128xf32, #tpu.memory_space<vmem>>, vector<8x128xf32>
    %cst = arith.constant dense<0.000000e+00> : vector<16x128xf32>
    %3 = tpu.matmul %1, %2, %cst {dimension_numbers = #tpu.dot_dimension_numbers<[1], [0], [0], [1], [0, 0, 1, 1], [], []>} : vector<16x8xf32>, vector<8x128xf32>, vector<16x128xf32> -> vector<16x128xf32>
    %4 = vector.shape_cast %3 : vector<16x128xf32> to vector<2x8x128xf32>
    %c0_4 = arith.constant 0 : index
    %c0_5 = arith.constant 0 : index
    %5 = vector.load %arg4[%c0_4, %c0_5] : memref<8x128xf32, #tpu.memory_space<vmem>>, vector<8x128xf32>
    %6 = vector.shape_cast %5 : vector<8x128xf32> to vector<1x8x128xf32>
    %7 = vector.broadcast %6 : vector<1x8x128xf32> to vector<2x8x128xf32>
    %8 = arith.addf %4, %7 : vector<2x8x128xf32>
    %c0_6 = arith.constant 0 : index
    %c0_7 = arith.constant 0 : index
    %c0_8 = arith.constant 0 : index
    %9 = vector.load %arg5[%c0_6, %c0_7, %c0_8] : memref<2x8x128xf32, #tpu.memory_space<vmem>>, vector<2x8x128xf32>
    tpu.vector_store %arg5[%c0_6, %c0_7, %c0_8], %8 {strides = array<i32>} : memref<2x8x128xf32, #tpu.memory_space<vmem>>, vector<2x8x128xf32>,
    return
  }
  func.func @transform_0(%arg0: i32, %arg1: i32) -> (i32, i32, i32) {
    %c0_i32 = arith.constant 0 : i32
    %c0_i32_0 = arith.constant 0 : i32
    return %arg0, %arg1, %c0_i32 : i32, i32, i32
  }
  func.func @transform_1(%arg0: i32, %arg1: i32) -> (i32, i32) {
    %c0_i32 = arith.constant 0 : i32
    %c0_i32_0 = arith.constant 0 : i32
    %c0_i32_1 = arith.constant 0 : i32
    return %c0_i32, %c0_i32_0 : i32, i32
  }
  func.func @transform_2(%arg0: i32, %arg1: i32) -> (i32, i32) {
    %c0_i32 = arith.constant 0 : i32
    %c0_i32_0 = arith.constant 0 : i32
    return %arg1, %c0_i32 : i32, i32
  }
  func.func @transform_3(%arg0: i32, %arg1: i32) -> (i32, i32, i32) {
    %c0_i32 = arith.constant 0 : i32
    %c0_i32_0 = arith.constant 0 : i32
    return %arg0, %arg1, %c0_i32 : i32, i32, i32
  }
}

</mosaic_0001>

<llo_original>
// kernel: tpu_custom_call.1
$region0: #{tpu_custom_call.1}
  #allocation0 [shape = 'u32[]', space=smem, size = 0x4, offset = 0x4, fixed_abs, tag = 'smem constant byte address 0x4 - core index']
  #allocation1 [shape = 'u32[72,128]{1,0:T(1,128)}', space=vmem, size = 0x9000, scoped, tag = 'internal scratch']
  %s0 = inlined_call_operand.hbm [shape: f32[2,8,8], index: 0, kind: input, shape index: {}]
  %s1 = inlined_call_operand.hbm [shape: f32[8,128], index: 1, kind: input, shape index: {}]
  %s2 = inlined_call_operand.hbm [shape: f32[8,128], index: 2, kind: input, shape index: {}]
  %s3 = inlined_call_operand.hbm [shape: f32[2,8,128], index: 3, kind: output, shape index: {}]
  %s4 = sld [smem:[#allocation0]]
  $region34: #{tpu_custom_call.1} parent=0
    _
  %s6 = ssub.s32 1, %s4
  %s7 = scalar_select 0, %s6, %s4
  $region1: #{tpu_custom_call.1} parent=0
    #allocation2 [shape = 'u8[8192]{0}', space=vmem, size = 0x2000, scoped, tag = 'input window, operand 0, single buffered']
    #allocation3 [shape = 's32[1]{0}', space=sflag, size = 0x4, scoped, tag = 'scoped memory for tpu_custom_call.1']
    #allocation4 [shape = 's32[1]{0}', space=sflag, size = 0x4, scoped, tag = 'scoped memory for tpu_custom_call.1']
    #allocation5 [shape = 'u8[4096]{0}', space=vmem, size = 0x1000, scoped, tag = 'input window, operand 1, single buffered']
    #allocation6 [shape = 's32[1]{0}', space=sflag, size = 0x4, scoped, tag = 'scoped memory for tpu_custom_call.1']
    #allocation7 [shape = 'u8[4096]{0}', space=vmem, size = 0x1000, scoped, tag = 'input window, operand 2, single buffered']
    #allocation8 [shape = 'u8[8192]{0}', space=vmem, size = 0x2000, scoped, tag = 'output window, operand 0, single buffered']
    %8 = vsyncpa [#allocation3], 0
    %9 = vsyncpa [#allocation6], 0
    %10 = vsyncpa [#allocation4], 0
    // Predicated region
    $region2: #{tpu_custom_call.1} parent=1 // pred_check
      _
    $region3: #{tpu_custom_call.1} parent=1 // pred_check_branch
      %12 = sbr.rel (0) target = $region5
    $region4: #{tpu_custom_call.1} parent=1 // pred_region
      %14 = vsyncadd [#allocation3], 0
      %s15 = sshll.u32 %s0, 4
      %s16 = int_to_ptr.hbm [resolvable:$true] %s15
      %s17 = sshll.u32 [#allocation2], 4
      %s18 = int_to_ptr.vmem [resolvable:$true] %s17
      %23 = dma.hbm_to_vmem [thread:$0]  %s16, 256, %s18, [#allocation3], 128, 128, 8
    $region5: #{tpu_custom_call.1} parent=1 // pred_fallthru
      _
    // Predicated region
    $region6: #{tpu_custom_call.1} parent=1 // pred_check
      _
    $region7: #{tpu_custom_call.1} parent=1 // pred_check_branch
      %25 = sbr.rel (0) target = $region9
    $region8: #{tpu_custom_call.1} parent=1 // pred_region
      %27 = vsyncadd [#allocation6], 0
      %s29 = sshll.u32 %s1, 4
      %s30 = int_to_ptr.hbm [resolvable:$true] %s29
      %s31 = sshll.u32 [#allocation5], 4
      %s32 = int_to_ptr.vmem [resolvable:$true] %s31
      %34 = dma.hbm_to_vmem [thread:$0]  %s30, 128, %s32, [#allocation6]
    $region9: #{tpu_custom_call.1} parent=1 // pred_fallthru
      _
    // Predicated region
    $region10: #{tpu_custom_call.1} parent=1 // pred_check
      _
    $region11: #{tpu_custom_call.1} parent=1 // pred_check_branch
      %36 = sbr.rel (0) target = $region13
    $region12: #{tpu_custom_call.1} parent=1 // pred_region
      %38 = vsyncadd [#allocation6], 0
      %s40 = sshll.u32 %s2, 4
      %s41 = int_to_ptr.hbm [resolvable:$true] %s40
      %s42 = sshll.u32 [#allocation7], 4
      %s43 = int_to_ptr.vmem [resolvable:$true] %s42
      %45 = dma.hbm_to_vmem [thread:$0]  %s41, 128, %s43, [#allocation6]
    $region13: #{tpu_custom_call.1} parent=1 // pred_fallthru
      _
    // Predicated region
    $region14: #{tpu_custom_call.1} parent=1 // pred_check
      _
    $region15: #{tpu_custom_call.1} parent=1 // pred_check_branch
      %47 = sbr.rel (0) target = $region17
    $region16: #{tpu_custom_call.1} parent=1 // pred_region
      %49 = dma.done [#allocation3], 256
    $region17: #{tpu_custom_call.1} parent=1 // pred_fallthru
      _
    // Predicated region
    $region18: #{tpu_custom_call.1} parent=1 // pred_check
      _
    $region19: #{tpu_custom_call.1} parent=1 // pred_check_branch
      %51 = sbr.rel (0) target = $region21
    $region20: #{tpu_custom_call.1} parent=1 // pred_region
      %53 = dma.done [#allocation6], 128
    $region21: #{tpu_custom_call.1} parent=1 // pred_fallthru
      _
    // Predicated region
    $region22: #{tpu_custom_call.1} parent=1 // pred_check
      _
    $region23: #{tpu_custom_call.1} parent=1 // pred_check_branch
      %55 = sbr.rel (0) target = $region25
    $region24: #{tpu_custom_call.1} parent=1 // pred_region
      %57 = dma.done [#allocation6], 128
    $region25: #{tpu_custom_call.1} parent=1 // pred_fallthru
      _
    %v58 = vld [vmem:[#allocation2] sm:$0xff]
    %v59 = vld [vmem:[#allocation2 + $0x8] sm:$0xff]
    %v60 = vld [vmem:[#allocation5] sm:$0xff]
    %vm61 = vcmask 64512
    %v63 = vsel %vm61, %v58, 0
    %v66 = vsel %vm61, %v59, 0
    %68 = vmatpush.msra.mxu0 0.0
    %69 = vmatpush.msra.mxu0 0.0
    %70 = vmatpush.msra.mxu0 0.0
    %71 = vmatpush.msra.mxu0 0.0
    %72 = vmatpush.msra.mxu0 0.0
    %73 = vmatpush.msra.mxu0 0.0
    %74 = vmatpush.msra.mxu0 0.0
    %75 = vmatpush.msra.mxu0 0.0
    %76 = vmatpush.msra.mxu0 0.0
    %77 = vmatpush.msra.mxu0 0.0
    %78 = vmatpush.msra.mxu0 0.0
    %79 = vmatpush.msra.mxu0 0.0
    %80 = vmatpush.msra.mxu0 0.0
    %81 = vmatpush.msra.mxu0 0.0
    %82 = vmatpush.msra.mxu0 0.0
    %83 = vmatpush.msra.mxu0 %v60
    %84 = vmatmul.f32.gmra.mxu0 %v63
    %v85 = vpop.f32.mrf.mxu0
    %v86 = vadd.f32 0.0, %v85
    %87 = vmatmul.f32.gmra.mxu0 %v66
    %v88 = vpop.f32.mrf.mxu0
    %v89 = vadd.f32 0.0, %v88
    %90 = vdwg.mxu0
    %v91 = vld [vmem:[#allocation7] sm:$0xff]
    %v92 = vadd.f32 %v86, %v91
    %v93 = vadd.f32 %v89, %v91
    %94 = vst [vmem:[#allocation8] sm:$0xff] %v92
    %95 = vst [vmem:[#allocation8 + $0x8] sm:$0xff] %v93
    // Predicated region
    $region26: #{tpu_custom_call.1} parent=1 // pred_check
      _
    $region27: #{tpu_custom_call.1} parent=1 // pred_check_branch
      %97 = sbr.rel (0) target = $region29
    $region28: #{tpu_custom_call.1} parent=1 // pred_region
      %99 = vsyncadd [#allocation4], 0
      %s100 = sshll.u32 [#allocation8], 4
      %s101 = int_to_ptr.vmem [resolvable:$true] %s100
      %s102 = sshll.u32 %s3, 4
      %s103 = int_to_ptr.hbm [resolvable:$true] %s102
      %108 = dma.vmem_to_hbm [thread:$0]  %s101, 256, %s103, [#allocation4], 128, 128, 8
    $region29: #{tpu_custom_call.1} parent=1 // pred_fallthru
      _
    // Predicated region
    $region30: #{tpu_custom_call.1} parent=1 // pred_check
      _
    $region31: #{tpu_custom_call.1} parent=1 // pred_check_branch
      %110 = sbr.rel (0) target = $region33
    $region32: #{tpu_custom_call.1} parent=1 // pred_region
      %112 = dma.done [#allocation4], 256
    $region33: #{tpu_custom_call.1} parent=1 // pred_fallthru
      _
    %113 = vsyncpa [#allocation3], 1
    %114 = vsyncpa [#allocation6], 1
    %115 = vsyncpa [#allocation4], 1

</llo_original>
